<compile_context>
chip_gen: v6e
topology: v6e:2x2x1
jax: 0.10.0
libtpu: 0.0.40
codegen_flags: <defaults>
</compile_context>

<pallas_src>
import functools
from typing import Tuple, Union

import jax
import jax.numpy as jnp
from jax.experimental import pallas as pl
from jax.experimental.pallas import tpu as pltpu

# PyTorch nn.RMSNorm(eps=None) uses torch.finfo(float32).eps.
RMS_EPS = float(jnp.finfo(jnp.float32).eps)

B_TILE = 128          # batch rows per grid step (multiple of 8)
LANE = 128            # vreg lane width; final output is padded to a multiple


def _policy_kernel(num_hidden_layers, *refs):
    """refs = (x, [W, b, g] * num_hidden_layers, W_out, b_out, out)."""
    x_ref = refs[0]
    out_ref = refs[-1]
    param_refs = refs[1:-1]

    h = x_ref[...]                                   # f32 [B_TILE, state_dim]
    idx = 0
    for _ in range(num_hidden_layers):
        w_ref = param_refs[idx]
        b_ref = param_refs[idx + 1]
        g_ref = param_refs[idx + 2]
        idx += 3
        # Linear: bf16 operands on the MXU, f32 accumulation.
        h = jnp.dot(h.astype(jnp.bfloat16), w_ref[...],
                    preferred_element_type=jnp.float32) + b_ref[...]
        # RMSNorm (f32 statistics).
        ms = jnp.mean(h * h, axis=-1, keepdims=True)
        h = h * jax.lax.rsqrt(ms + RMS_EPS) * g_ref[...]
        # SiLU; sigmoid's exp/recip run on the EUP.
        h = h * jax.nn.sigmoid(h)

    # Final Linear (lane-padded output columns; no norm / activation).
    w_ref = param_refs[idx]
    b_ref = param_refs[idx + 1]
    out = jnp.dot(h.astype(jnp.bfloat16), w_ref[...],
                  preferred_element_type=jnp.float32) + b_ref[...]
    out_ref[...] = out.astype(out_ref.dtype)


def init_policy_params(key, state_dim, num_actions, action_type,
                       layer_num=2, hidden_dim=128):
    """Init mirroring the PyTorch module: Linear weights ~ U(-0.003, 0.003),
    biases zero (explicit in the module), RMSNorm weight ones.

    Weights are stored in bf16 (MXU operands); biases / gammas in f32.
    The final Linear is zero-padded to a lane-dense multiple of 128 columns.
    Returns (params, out_dim, padded_out_dim)."""
    out_dim = num_actions * 2 if action_type == "continuous" else num_actions
    padded_out_dim = ((out_dim + LANE - 1) // LANE) * LANE
    dims = [state_dim] + [hidden_dim] * layer_num

    params = []
    for li in range(layer_num):
        key, wk = jax.random.split(key)
        w = jax.random.uniform(wk, (dims[li], dims[li + 1]),
                               jnp.float32, -0.003, 0.003).astype(jnp.bfloat16)
        b = jnp.zeros((1, dims[li + 1]), jnp.float32)
        g = jnp.ones((1, dims[li + 1]), jnp.float32)
        params.extend([w, b, g])

    key, wk = jax.random.split(key)
    w_out = jax.random.uniform(wk, (hidden_dim, out_dim),
                               jnp.float32, -0.003, 0.003)
    w_out = jnp.pad(w_out, ((0, 0), (0, padded_out_dim - out_dim)))
    b_out = jnp.zeros((1, padded_out_dim), jnp.float32)
    params.extend([w_out.astype(jnp.bfloat16), b_out])
    return params, out_dim, padded_out_dim


def policy_forward(x, params, out_dim, padded_out_dim, action_type,
                   layer_num=2
                   ) -> Union[jnp.ndarray, Tuple[jnp.ndarray, jnp.ndarray]]:
    assert x.ndim == 2
    B, state_dim = x.shape

    # Pad batch up to a multiple of the batch tile (zero rows are harmless:
    # RMSNorm of zeros stays finite and they are sliced away below).
    num_tiles = pl.cdiv(B, B_TILE)
    B_pad = num_tiles * B_TILE
    if B_pad != B:
        x = jnp.pad(x, ((0, B_pad - B), (0, 0)))

    kernel = functools.partial(_policy_kernel, layer_num)

    # Batch-tiled input / output; params are full blocks with a constant
    # index_map, so they are DMA'd once and stay VMEM-resident across steps.
    x_spec = pl.BlockSpec((B_TILE, state_dim), lambda i: (i, 0))
    param_specs = [pl.BlockSpec(p.shape, lambda i: (0, 0)) for p in params]
    out_spec = pl.BlockSpec((B_TILE, padded_out_dim), lambda i: (i, 0))

    out = pl.pallas_call(
        kernel,
        out_shape=jax.ShapeDtypeStruct((B_pad, padded_out_dim), jnp.float32),
        grid=(num_tiles,),
        in_specs=[x_spec] + param_specs,
        out_specs=out_spec,
        compiler_params=pltpu.CompilerParams(
            dimension_semantics=("parallel",),   # shard batch tiles across TCs
            vmem_limit_bytes=32 * 1024 * 1024,   # explicit; safe on v7x 64 MiB
        ),
    )(x, *params)

    # Slice directly from the padded slab (no jnp.split copies).
    if action_type == "continuous":
        a = out_dim // 2
        return out[:B, :a], out[:B, a:out_dim]
    return out[:B, :out_dim]


def _reference_forward(x, params, out_dim, action_type, layer_num=2):
    """Pure-JAX reference with the same bf16 matmul casting."""
    h = x
    idx = 0
    for _ in range(layer_num):
        w, b, g = params[idx], params[idx + 1], params[idx + 2]
        idx += 3
        h = jnp.dot(h.astype(jnp.bfloat16), w,
                    preferred_element_type=jnp.float32) + b
        ms = jnp.mean(h * h, axis=-1, keepdims=True)
        h = h * jax.lax.rsqrt(ms + RMS_EPS) * g
        h = h * jax.nn.sigmoid(h)
    w, b = params[idx], params[idx + 1]
    out = jnp.dot(h.astype(jnp.bfloat16), w,
                  preferred_element_type=jnp.float32) + b
    if action_type == "continuous":
        a = out_dim // 2
        return out[:, :a], out[:, a:out_dim]
    return out[:, :out_dim]


if __name__ == "__main__":
    key = jax.random.PRNGKey(0)

    # Small, module-consistent shapes.
    batch = 8
    state_dim = 16
    num_actions = 6
    hidden_dim = 128
    layer_num = 2

    key, pkey, xkey = jax.random.split(key, 3)
    x = jax.random.normal(xkey, (batch, state_dim), jnp.float32)

    # Continuous branch.
    params, out_dim, padded = init_policy_params(
        pkey, state_dim, num_actions, "continuous", layer_num, hidden_dim)
    mu, logstd = policy_forward(x, params, out_dim, padded, "continuous",
                                layer_num)
    jax.block_until_ready((mu, logstd))
    assert mu.shape == (batch, num_actions)
    assert logstd.shape == (batch, num_actions)

    mu_ref, logstd_ref = _reference_forward(x, params, out_dim, "continuous",
                                            layer_num)
    assert jnp.allclose(mu, mu_ref, atol=1e-3, rtol=1e-3)
    assert jnp.allclose(logstd, logstd_ref, atol=1e-3, rtol=1e-3)

    # Discrete branch.
    key, pkey2 = jax.random.split(key)
    params_d, out_dim_d, padded_d = init_policy_params(
        pkey2, state_dim, num_actions, "discrete", layer_num, hidden_dim)
    logits = policy_forward(x, params_d, out_dim_d, padded_d, "discrete",
                            layer_num)
    jax.block_until_ready(logits)
    assert logits.shape == (batch, num_actions)

    logits_ref = _reference_forward(x, params_d, out_dim_d, "discrete",
                                    layer_num)
    assert jnp.allclose(logits, logits_ref, atol=1e-3, rtol=1e-3)

    print("KERNEL_OK")
</pallas_src>

<mosaic_0001>
module attributes {stable_mosaic.version = 11 : i64} {
  func.func @_policy_kernel(%arg0: i32, %arg1: memref<128x16xf32, #tpu.memory_space<vmem>>, %arg2: memref<16x128xbf16, #tpu.memory_space<vmem>>, %arg3: memref<1x128xf32, #tpu.memory_space<vmem>>, %arg4: memref<1x128xf32, #tpu.memory_space<vmem>>, %arg5: memref<128x128xbf16, #tpu.memory_space<vmem>>, %arg6: memref<1x128xf32, #tpu.memory_space<vmem>>, %arg7: memref<1x128xf32, #tpu.memory_space<vmem>>, %arg8: memref<128x128xbf16, #tpu.memory_space<vmem>>, %arg9: memref<1x128xf32, #tpu.memory_space<vmem>>, %arg10: memref<128x128xf32, #tpu.memory_space<vmem>>) attributes {dimension_semantics = [#tpu.dimension_semantics<parallel>], iteration_bounds = array<i64: 1>, scalar_prefetch = 0 : i64, scratch_operands = 0 : i64, tpu.core_type = #tpu.core_type<tc>, window_params = [{transform_indices = @transform_0, window_bounds = array<i64: 128, 16>}, {pipeline_mode = #tpu.pipeline_mode<synchronous>, transform_indices = @transform_1, window_bounds = array<i64: 16, 128>}, {pipeline_mode = #tpu.pipeline_mode<synchronous>, transform_indices = @transform_2, window_bounds = array<i64: 1, 128>}, {pipeline_mode = #tpu.pipeline_mode<synchronous>, transform_indices = @transform_3, window_bounds = array<i64: 1, 128>}, {pipeline_mode = #tpu.pipeline_mode<synchronous>, transform_indices = @transform_4, window_bounds = array<i64: 128, 128>}, {pipeline_mode = #tpu.pipeline_mode<synchronous>, transform_indices = @transform_5, window_bounds = array<i64: 1, 128>}, {pipeline_mode = #tpu.pipeline_mode<synchronous>, transform_indices = @transform_6, window_bounds = array<i64: 1, 128>}, {pipeline_mode = #tpu.pipeline_mode<synchronous>, transform_indices = @transform_7, window_bounds = array<i64: 128, 128>}, {pipeline_mode = #tpu.pipeline_mode<synchronous>, transform_indices = @transform_8, window_bounds = array<i64: 1, 128>}, {transform_indices = @transform_9, window_bounds = array<i64: 128, 128>}]} {
    %c0 = arith.constant 0 : index
    %c0_0 = arith.constant 0 : index
    %0 = vector.load %arg1[%c0, %c0_0] : memref<128x16xf32, #tpu.memory_space<vmem>>, vector<128x16xf32>
    %1 = arith.truncf %0 : vector<128x16xf32> to vector<128x16xbf16>
    %c0_1 = arith.constant 0 : index
    %c0_2 = arith.constant 0 : index
    %2 = vector.load %arg2[%c0_1, %c0_2] : memref<16x128xbf16, #tpu.memory_space<vmem>>, vector<16x128xbf16>
    %cst = arith.constant dense<0.000000e+00> : vector<128x128xf32>
    %3 = tpu.matmul %1, %2, %cst {dimension_numbers = #tpu.dot_dimension_numbers<[1], [0], [0], [1], [0, 0, 1, 1], [], []>} : vector<128x16xbf16>, vector<16x128xbf16>, vector<128x128xf32> -> vector<128x128xf32>
    %c0_3 = arith.constant 0 : index
    %c0_4 = arith.constant 0 : index
    %4 = vector.load %arg3[%c0_3, %c0_4] : memref<1x128xf32, #tpu.memory_space<vmem>>, vector<1x128xf32>
    %5 = vector.broadcast %4 : vector<1x128xf32> to vector<128x128xf32>
    %6 = arith.addf %3, %5 : vector<128x128xf32>
    %7 = arith.mulf %6, %6 : vector<128x128xf32>
    %cst_5 = arith.constant dense<0.000000e+00> : vector<128xf32>
    %8 = vector.multi_reduction <add>, %7, %cst_5 [1] : vector<128x128xf32> to vector<128xf32>
    %9 = vector.shape_cast %8 : vector<128xf32> to vector<128x1xf32>
    %cst_6 = arith.constant 1.280000e+02 : f32
    %10 = vector.broadcast %cst_6 : f32 to vector<128x1xf32>
    %11 = arith.divf %9, %10 : vector<128x1xf32>
    %cst_7 = arith.constant 1.1920929E-7 : f32
    %12 = vector.broadcast %cst_7 : f32 to vector<128x1xf32>
    %13 = arith.addf %11, %12 : vector<128x1xf32>
    %14 = math.rsqrt %13 : vector<128x1xf32>
    %15 = vector.broadcast %14 : vector<128x1xf32> to vector<128x128xf32>
    %16 = arith.mulf %6, %15 : vector<128x128xf32>
    %c0_8 = arith.constant 0 : index
    %c0_9 = arith.constant 0 : index
    %17 = vector.load %arg4[%c0_8, %c0_9] : memref<1x128xf32, #tpu.memory_space<vmem>>, vector<1x128xf32>
    %18 = vector.broadcast %17 : vector<1x128xf32> to vector<128x128xf32>
    %19 = arith.mulf %16, %18 : vector<128x128xf32>
    %20 = arith.negf %19 : vector<128x128xf32>
    %21 = math.exp %20 : vector<128x128xf32>
    %cst_10 = arith.constant 1.000000e+00 : f32
    %22 = vector.broadcast %cst_10 : f32 to vector<128x128xf32>
    %23 = arith.addf %22, %21 : vector<128x128xf32>
    %24 = arith.divf %22, %23 : vector<128x128xf32>
    %25 = arith.mulf %19, %24 : vector<128x128xf32>
    %26 = arith.truncf %25 : vector<128x128xf32> to vector<128x128xbf16>
    %c0_11 = arith.constant 0 : index
    %c0_12 = arith.constant 0 : index
    %27 = vector.load %arg5[%c0_11, %c0_12] : memref<128x128xbf16, #tpu.memory_space<vmem>>, vector<128x128xbf16>
    %cst_13 = arith.constant dense<0.000000e+00> : vector<128x128xf32>
    %28 = tpu.matmul %26, %27, %cst_13 {dimension_numbers = #tpu.dot_dimension_numbers<[1], [0], [0], [1], [0, 0, 1, 1], [], []>} : vector<128x128xbf16>, vector<128x128xbf16>, vector<128x128xf32> -> vector<128x128xf32>
    %c0_14 = arith.constant 0 : index
    %c0_15 = arith.constant 0 : index
    %29 = vector.load %arg6[%c0_14, %c0_15] : memref<1x128xf32, #tpu.memory_space<vmem>>, vector<1x128xf32>
    %30 = vector.broadcast %29 : vector<1x128xf32> to vector<128x128xf32>
    %31 = arith.addf %28, %30 : vector<128x128xf32>
    %32 = arith.mulf %31, %31 : vector<128x128xf32>
    %cst_16 = arith.constant dense<0.000000e+00> : vector<128xf32>
    %33 = vector.multi_reduction <add>, %32, %cst_16 [1] : vector<128x128xf32> to vector<128xf32>
    %34 = vector.shape_cast %33 : vector<128xf32> to vector<128x1xf32>
    %cst_17 = arith.constant 1.280000e+02 : f32
    %35 = vector.broadcast %cst_17 : f32 to vector<128x1xf32>
    %36 = arith.divf %34, %35 : vector<128x1xf32>
    %cst_18 = arith.constant 1.1920929E-7 : f32
    %37 = vector.broadcast %cst_18 : f32 to vector<128x1xf32>
    %38 = arith.addf %36, %37 : vector<128x1xf32>
    %39 = math.rsqrt %38 : vector<128x1xf32>
    %40 = vector.broadcast %39 : vector<128x1xf32> to vector<128x128xf32>
    %41 = arith.mulf %31, %40 : vector<128x128xf32>
    %c0_19 = arith.constant 0 : index
    %c0_20 = arith.constant 0 : index
    %42 = vector.load %arg7[%c0_19, %c0_20] : memref<1x128xf32, #tpu.memory_space<vmem>>, vector<1x128xf32>
    %43 = vector.broadcast %42 : vector<1x128xf32> to vector<128x128xf32>
    %44 = arith.mulf %41, %43 : vector<128x128xf32>
    %45 = arith.negf %44 : vector<128x128xf32>
    %46 = math.exp %45 : vector<128x128xf32>
    %cst_21 = arith.constant 1.000000e+00 : f32
    %47 = vector.broadcast %cst_21 : f32 to vector<128x128xf32>
    %48 = arith.addf %47, %46 : vector<128x128xf32>
    %49 = arith.divf %47, %48 : vector<128x128xf32>
    %50 = arith.mulf %44, %49 : vector<128x128xf32>
    %51 = arith.truncf %50 : vector<128x128xf32> to vector<128x128xbf16>
    %c0_22 = arith.constant 0 : index
    %c0_23 = arith.constant 0 : index
    %52 = vector.load %arg8[%c0_22, %c0_23] : memref<128x128xbf16, #tpu.memory_space<vmem>>, vector<128x128xbf16>
    %cst_24 = arith.constant dense<0.000000e+00> : vector<128x128xf32>
    %53 = tpu.matmul %51, %52, %cst_24 {dimension_numbers = #tpu.dot_dimension_numbers<[1], [0], [0], [1], [0, 0, 1, 1], [], []>} : vector<128x128xbf16>, vector<128x128xbf16>, vector<128x128xf32> -> vector<128x128xf32>
    %c0_25 = arith.constant 0 : index
    %c0_26 = arith.constant 0 : index
    %54 = vector.load %arg9[%c0_25, %c0_26] : memref<1x128xf32, #tpu.memory_space<vmem>>, vector<1x128xf32>
    %55 = vector.broadcast %54 : vector<1x128xf32> to vector<128x128xf32>
    %56 = arith.addf %53, %55 : vector<128x128xf32>
    %c0_27 = arith.constant 0 : index
    %c0_28 = arith.constant 0 : index
    %57 = vector.load %arg10[%c0_27, %c0_28] : memref<128x128xf32, #tpu.memory_space<vmem>>, vector<128x128xf32>
    tpu.vector_store %arg10[%c0_27, %c0_28], %56 {strides = array<i32>} : memref<128x128xf32, #tpu.memory_space<vmem>>, vector<128x128xf32>,
    return
  }
  func.func @transform_0(%arg0: i32) -> (i32, i32) {
    %c0_i32 = arith.constant 0 : i32
    %c0_i32_0 = arith.constant 0 : i32
    return %arg0, %c0_i32 : i32, i32
  }
  func.func @transform_1(%arg0: i32) -> (i32, i32) {
    %c0_i32 = arith.constant 0 : i32
    %c0_i32_0 = arith.constant 0 : i32
    %c0_i32_1 = arith.constant 0 : i32
    return %c0_i32, %c0_i32_0 : i32, i32
  }
  func.func @transform_2(%arg0: i32) -> (i32, i32) {
    %c0_i32 = arith.constant 0 : i32
    %c0_i32_0 = arith.constant 0 : i32
    %c0_i32_1 = arith.constant 0 : i32
    return %c0_i32, %c0_i32_0 : i32, i32
  }
  func.func @transform_3(%arg0: i32) -> (i32, i32) {
    %c0_i32 = arith.constant 0 : i32
    %c0_i32_0 = arith.constant 0 : i32
    %c0_i32_1 = arith.constant 0 : i32
    return %c0_i32, %c0_i32_0 : i32, i32
  }
  func.func @transform_4(%arg0: i32) -> (i32, i32) {
    %c0_i32 = arith.constant 0 : i32
    %c0_i32_0 = arith.constant 0 : i32
    %c0_i32_1 = arith.constant 0 : i32
    return %c0_i32, %c0_i32_0 : i32, i32
  }
  func.func @transform_5(%arg0: i32) -> (i32, i32) {
    %c0_i32 = arith.constant 0 : i32
    %c0_i32_0 = arith.constant 0 : i32
    %c0_i32_1 = arith.constant 0 : i32
    return %c0_i32, %c0_i32_0 : i32, i32
  }
  func.func @transform_6(%arg0: i32) -> (i32, i32) {
    %c0_i32 = arith.constant 0 : i32
    %c0_i32_0 = arith.constant 0 : i32
    %c0_i32_1 = arith.constant 0 : i32
    return %c0_i32, %c0_i32_0 : i32, i32
  }
  func.func @transform_7(%arg0: i32) -> (i32, i32) {
    %c0_i32 = arith.constant 0 : i32
    %c0_i32_0 = arith.constant 0 : i32
    %c0_i32_1 = arith.constant 0 : i32
    return %c0_i32, %c0_i32_0 : i32, i32
  }
  func.func @transform_8(%arg0: i32) -> (i32, i32) {
    %c0_i32 = arith.constant 0 : i32
    %c0_i32_0 = arith.constant 0 : i32
    %c0_i32_1 = arith.constant 0 : i32
    return %c0_i32, %c0_i32_0 : i32, i32
  }
  func.func @transform_9(%arg0: i32) -> (i32, i32) {
    %c0_i32 = arith.constant 0 : i32
    %c0_i32_0 = arith.constant 0 : i32
    return %arg0, %c0_i32 : i32, i32
  }
}

</mosaic_0001>

<llo_original>
// kernel: tpu_custom_call.1
$region0: #{tpu_custom_call.1}
  #allocation0 [shape = 'u32[]', space=smem, size = 0x4, offset = 0x4, fixed_abs, tag = 'smem constant byte address 0x4 - core index']
  #allocation1 [shape = 'u32[144,128]{1,0:T(1,128)}', space=vmem, size = 0x12000, scoped, tag = 'internal scratch']
  %s0 = inlined_call_operand.vmem [shape: f32[128,16], index: 0, kind: input, shape index: {}]
  %s1 = inlined_call_operand.vmem [shape: bf16[16,128], index: 1, kind: input, shape index: {}]
  %s2 = inlined_call_operand.vmem [shape: f32[1,128], index: 2, kind: input, shape index: {}]
  %s3 = inlined_call_operand.vmem [shape: f32[1,128], index: 3, kind: input, shape index: {}]
  %s4 = inlined_call_operand.vmem [shape: bf16[128,128], index: 4, kind: input, shape index: {}]
  %s5 = inlined_call_operand.vmem [shape: f32[1,128], index: 5, kind: input, shape index: {}]
  %s6 = inlined_call_operand.vmem [shape: f32[1,128], index: 6, kind: input, shape index: {}]
  %s7 = inlined_call_operand.vmem [shape: bf16[128,128], index: 7, kind: input, shape index: {}]
  %s8 = inlined_call_operand.vmem [shape: f32[1,128], index: 8, kind: input, shape index: {}]
  %s9 = inlined_call_operand.hbm [shape: f32[128,128], index: 9, kind: output, shape index: {}]
  %s10 = sld [smem:[#allocation0]]
  $region46: #{tpu_custom_call.1} parent=0
    _
  %s12 = ssub.s32 1, %s10
  %s13 = scalar_select 0, %s12, %s10
  $region1: #{tpu_custom_call.1} parent=0
    #allocation2 [shape = 'u8[65536]{0}', space=vmem, size = 0x10000, scoped, tag = 'output window, operand 0, single buffered']
    #allocation3 [shape = 's32[1]{0}', space=sflag, size = 0x4, scoped, tag = 'scoped memory for tpu_custom_call.1']
    %14 = vsyncpa [#allocation3], 0
    // Predicated region
    $region2: #{tpu_custom_call.1} parent=1 // pred_check
      _
    $region3: #{tpu_custom_call.1} parent=1 // pred_check_branch
      %16 = sbr.rel (0) target = $region5
    $region4: #{tpu_custom_call.1} parent=1 // pred_region
      _
    $region5: #{tpu_custom_call.1} parent=1 // pred_fallthru
      _
    // Predicated region
    $region6: #{tpu_custom_call.1} parent=1 // pred_check
      _
    $region7: #{tpu_custom_call.1} parent=1 // pred_check_branch
      %18 = sbr.rel (0) target = $region9
    $region8: #{tpu_custom_call.1} parent=1 // pred_region
      _
    $region9: #{tpu_custom_call.1} parent=1 // pred_fallthru
      _
    // Predicated region
    $region10: #{tpu_custom_call.1} parent=1 // pred_check
      _
    $region11: #{tpu_custom_call.1} parent=1 // pred_check_branch
      %20 = sbr.rel (0) target = $region13
    $region12: #{tpu_custom_call.1} parent=1 // pred_region
      _
    $region13: #{tpu_custom_call.1} parent=1 // pred_fallthru
      _
    // Predicated region
    $region14: #{tpu_custom_call.1} parent=1 // pred_check
      _
    $region15: #{tpu_custom_call.1} parent=1 // pred_check_branch
      %22 = sbr.rel (0) target = $region17
    $region16: #{tpu_custom_call.1} parent=1 // pred_region
      _
    $region17: #{tpu_custom_call.1} parent=1 // pred_fallthru
      _
    // Predicated region
    $region18: #{tpu_custom_call.1} parent=1 // pred_check
      _
    $region19: #{tpu_custom_call.1} parent=1 // pred_check_branch
      %24 = sbr.rel (0) target = $region21
    $region20: #{tpu_custom_call.1} parent=1 // pred_region
      _
    $region21: #{tpu_custom_call.1} parent=1 // pred_fallthru
      _
    // Predicated region
    $region22: #{tpu_custom_call.1} parent=1 // pred_check
      _
    $region23: #{tpu_custom_call.1} parent=1 // pred_check_branch
      %26 = sbr.rel (0) target = $region25
    $region24: #{tpu_custom_call.1} parent=1 // pred_region
      _
    $region25: #{tpu_custom_call.1} parent=1 // pred_fallthru
      _
    // Predicated region
    $region26: #{tpu_custom_call.1} parent=1 // pred_check
      _
    $region27: #{tpu_custom_call.1} parent=1 // pred_check_branch
      %28 = sbr.rel (0) target = $region29
    $region28: #{tpu_custom_call.1} parent=1 // pred_region
      _
    $region29: #{tpu_custom_call.1} parent=1 // pred_fallthru
      _
    // Predicated region
    $region30: #{tpu_custom_call.1} parent=1 // pred_check
      _
    $region31: #{tpu_custom_call.1} parent=1 // pred_check_branch
      %30 = sbr.rel (0) target = $region33
    $region32: #{tpu_custom_call.1} parent=1 // pred_region
      _
    $region33: #{tpu_custom_call.1} parent=1 // pred_fallthru
      _
    // Predicated region
    $region34: #{tpu_custom_call.1} parent=1 // pred_check
      _
    $region35: #{tpu_custom_call.1} parent=1 // pred_check_branch
      %32 = sbr.rel (0) target = $region37
    $region36: #{tpu_custom_call.1} parent=1 // pred_region
      _
    $region37: #{tpu_custom_call.1} parent=1 // pred_fallthru
      _
    %v34 = vld [vmem:[%s0] sm:$0xff]
    %v35 = vld [vmem:[%s0 + $0x8] sm:$0xff]
    %v36 = vld [vmem:[%s0 + $0x10] sm:$0xff]
    %v37 = vld [vmem:[%s0 + $0x18] sm:$0xff]
    %v38 = vld [vmem:[%s0 + $0x20] sm:$0xff]
    %v39 = vld [vmem:[%s0 + $0x28] sm:$0xff]
    %v40 = vld [vmem:[%s0 + $0x30] sm:$0xff]
    %v41 = vld [vmem:[%s0 + $0x38] sm:$0xff]
    %v42 = vld [vmem:[%s0 + $0x40] sm:$0xff]
    %v43 = vld [vmem:[%s0 + $0x48] sm:$0xff]
    %v44 = vld [vmem:[%s0 + $0x50] sm:$0xff]
    %v45 = vld [vmem:[%s0 + $0x58] sm:$0xff]
    %v46 = vld [vmem:[%s0 + $0x60] sm:$0xff]
    %v47 = vld [vmem:[%s0 + $0x68] sm:$0xff]
    %v48 = vld [vmem:[%s0 + $0x70] sm:$0xff]
    %v49 = vld [vmem:[%s0 + $0x78] sm:$0xff]
    %v50 = vpack.c.bf16 %v35, %v34
    %v51 = vpack.c.bf16 %v37, %v36
    %v52 = vpack.c.bf16 %v39, %v38
    %v53 = vpack.c.bf16 %v41, %v40
    %v54 = vpack.c.bf16 %v43, %v42
    %v55 = vpack.c.bf16 %v45, %v44
    %v56 = vpack.c.bf16 %v47, %v46
    %v57 = vpack.c.bf16 %v49, %v48
    %v58 = vld [vmem:[%s1] sm:$0xf]
    %v59 = vld [vmem:[%s1 + $0x4] sm:$0xf]
    %v60 = vld [vmem:[%s2] sm:$0x1]
    %v62 = vlaneseq
    %v63 = vshrl.u32 %v62, 7
    %v64 = vsub.s32 0, %v63
    %v65 = vrot.slane %v60, %v64
    %v69 = vunpack.c.l.b16 %v58
    %v70 = vunpack.c.l.b16 %v59
    %v71 = vpack.c.b16 %v70, %v69
    %vm73 = vcmask 130048
    %v75 = vsel %vm73, %v50, 0
    %v78 = vsel %vm73, %v51, 0
    %v81 = vsel %vm73, %v52, 0
    %v84 = vsel %vm73, %v53, 0
    %v87 = vsel %vm73, %v54, 0
    %v90 = vsel %vm73, %v55, 0
    %v93 = vsel %vm73, %v56, 0
    %v96 = vsel %vm73, %v57, 0
    %98 = vmatprep.subr.bf16.mxu0 0
    %99 = vmatpush1.bf16.msra.mxu0 0
    %100 = vmatprep.subr.bf16.mxu0 0
    %101 = vmatpush1.bf16.msra.mxu0 0
    %102 = vmatprep.subr.bf16.mxu0 0
    %103 = vmatpush1.bf16.msra.mxu0 0
    %104 = vmatprep.subr.bf16.mxu0 0
    %105 = vmatpush1.bf16.msra.mxu0 0
    %106 = vmatprep.subr.bf16.mxu0 0
    %107 = vmatpush1.bf16.msra.mxu0 0
    %108 = vmatprep.subr.bf16.mxu0 0
    %109 = vmatpush1.bf16.msra.mxu0 0
    %110 = vmatprep.subr.bf16.mxu0 0
    %111 = vmatpush1.bf16.msra.mxu0 0
    %112 = vmatprep.subr.bf16.mxu0 0
    %113 = vmatpush1.bf16.msra.mxu0 %v71
    %114 = vmatprep.subr.bf16.mxu0 0
    %115 = vmatpush2.bf16.msra.mxu0 0
    %116 = vmatprep.subr.bf16.mxu0 0
    %117 = vmatpush2.bf16.msra.mxu0 0
    %118 = vmatprep.subr.bf16.mxu0 0
    %119 = vmatpush2.bf16.msra.mxu0 0
    %120 = vmatprep.subr.bf16.mxu0 0
    %121 = vmatpush2.bf16.msra.mxu0 0
    %122 = vmatprep.subr.bf16.mxu0 0
    %123 = vmatpush2.bf16.msra.mxu0 0
    %124 = vmatprep.subr.bf16.mxu0 0
    %125 = vmatpush2.bf16.msra.mxu0 0
    %126 = vmatprep.subr.bf16.mxu0 0
    %127 = vmatpush2.bf16.msra.mxu0 0
    %128 = vmatprep.subr.bf16.mxu0 0
    %129 = vmatpush2.bf16.msra.mxu0 0
    %130 = vmatprep.mubr.bf16.mxu0 0
    %131 = vmatmul.mubr.bf16.gmra.mxu0 %v75
    %v132 = vpop.f32.mrf.mxu0
    %v133 = vadd.f32 %v65, %v132
    %v134 = vpop.f32.mrf.mxu0
    %v135 = vpop.f32.mrf.mxu0
    %v136 = vadd.f32 %v65, %v135
    %v137 = vpop.f32.mrf.mxu0
    %138 = vmatprep.mubr.bf16.mxu0 0
    %139 = vmatmul.mubr.bf16.gmra.mxu0 %v78
    %v140 = vpop.f32.mrf.mxu0
    %v141 = vadd.f32 %v65, %v140
    %v142 = vpop.f32.mrf.mxu0
    %v143 = vpop.f32.mrf.mxu0
    %v144 = vadd.f32 %v65, %v143
    %v145 = vpop.f32.mrf.mxu0
    %146 = vmatprep.mubr.bf16.mxu0 0
    %147 = vmatmul.mubr.bf16.gmra.mxu0 %v81
    %v148 = vpop.f32.mrf.mxu0
    %v149 = vadd.f32 %v65, %v148
    %v150 = vpop.f32.mrf.mxu0
    %v151 = vpop.f32.mrf.mxu0
    %v152 = vadd.f32 %v65, %v151
    %v153 = vpop.f32.mrf.mxu0
    %154 = vmatprep.mubr.bf16.mxu0 0
    %155 = vmatmul.mubr.bf16.gmra.mxu0 %v84
    %v156 = vpop.f32.mrf.mxu0
    %v157 = vadd.f32 %v65, %v156
    %v158 = vpop.f32.mrf.mxu0
    %v159 = vpop.f32.mrf.mxu0
    %v160 = vadd.f32 %v65, %v159
    %v161 = vpop.f32.mrf.mxu0
    %162 = vmatprep.mubr.bf16.mxu0 0
    %163 = vmatmul.mubr.bf16.gmra.mxu0 %v87
    %v164 = vpop.f32.mrf.mxu0
    %v165 = vadd.f32 %v65, %v164
    %v166 = vpop.f32.mrf.mxu0
    %v167 = vpop.f32.mrf.mxu0
    %v168 = vadd.f32 %v65, %v167
    %v169 = vpop.f32.mrf.mxu0
    %170 = vmatprep.mubr.bf16.mxu0 0
    %171 = vmatmul.mubr.bf16.gmra.mxu0 %v90
    %v172 = vpop.f32.mrf.mxu0
    %v173 = vadd.f32 %v65, %v172
    %v174 = vpop.f32.mrf.mxu0
    %v175 = vpop.f32.mrf.mxu0
    %v176 = vadd.f32 %v65, %v175
    %v177 = vpop.f32.mrf.mxu0
    %178 = vmatprep.mubr.bf16.mxu0 0
    %179 = vmatmul.mubr.bf16.gmra.mxu0 %v93
    %v180 = vpop.f32.mrf.mxu0
    %v181 = vadd.f32 %v65, %v180
    %v182 = vpop.f32.mrf.mxu0
    %v183 = vpop.f32.mrf.mxu0
    %v184 = vadd.f32 %v65, %v183
    %v185 = vpop.f32.mrf.mxu0
    %186 = vmatprep.mubr.bf16.mxu0 0
    %187 = vmatmul.mubr.bf16.gmra.mxu0 %v96
    %v188 = vpop.f32.mrf.mxu0
    %v189 = vadd.f32 %v65, %v188
    %v190 = vpop.f32.mrf.mxu0
    %v191 = vpop.f32.mrf.mxu0
    %v192 = vadd.f32 %v65, %v191
    %v193 = vpop.f32.mrf.mxu0
    %194 = vdwg.mxu0
    %v195 = vmul.f32 %v133, %v133
    %v196 = vmul.f32 %v136, %v136
    %v197 = vmul.f32 %v141, %v141
    %v198 = vmul.f32 %v144, %v144
    %v199 = vmul.f32 %v149, %v149
    %v200 = vmul.f32 %v152, %v152
    %v201 = vmul.f32 %v157, %v157
    %v202 = vmul.f32 %v160, %v160
    %v203 = vmul.f32 %v165, %v165
    %v204 = vmul.f32 %v168, %v168
    %v205 = vmul.f32 %v173, %v173
    %v206 = vmul.f32 %v176, %v176
    %v207 = vmul.f32 %v181, %v181
    %v208 = vmul.f32 %v184, %v184
    %v209 = vmul.f32 %v189, %v189
    %v210 = vmul.f32 %v192, %v192
    %211 = vadd.xlane.f32.xlu0 %v195
    %v212 = vpop.xlane.xlu0 %211
    %213 = vadd.xlane.f32.xlu0 %v196
    %v214 = vpop.xlane.xlu0 %213
    %215 = vadd.xlane.f32.xlu0 %v197
    %v216 = vpop.xlane.xlu0 %215
    %217 = vadd.xlane.f32.xlu0 %v198
    %v218 = vpop.xlane.xlu0 %217
    %219 = vadd.xlane.f32.xlu0 %v199
    %v220 = vpop.xlane.xlu0 %219
    %221 = vadd.xlane.f32.xlu0 %v200
    %v222 = vpop.xlane.xlu0 %221
    %223 = vadd.xlane.f32.xlu0 %v201
    %v224 = vpop.xlane.xlu0 %223
    %225 = vadd.xlane.f32.xlu0 %v202
    %v226 = vpop.xlane.xlu0 %225
    %227 = vadd.xlane.f32.xlu0 %v203
    %v228 = vpop.xlane.xlu0 %227
    %229 = vadd.xlane.f32.xlu0 %v204
    %v230 = vpop.xlane.xlu0 %229
    %231 = vadd.xlane.f32.xlu0 %v205
    %v232 = vpop.xlane.xlu0 %231
    %233 = vadd.xlane.f32.xlu0 %v206
    %v234 = vpop.xlane.xlu0 %233
    %235 = vadd.xlane.f32.xlu0 %v207
    %v236 = vpop.xlane.xlu0 %235
    %237 = vadd.xlane.f32.xlu0 %v208
    %v238 = vpop.xlane.xlu0 %237
    %239 = vadd.xlane.f32.xlu0 %v209
    %v240 = vpop.xlane.xlu0 %239
    %241 = vadd.xlane.f32.xlu0 %v210
    %v242 = vpop.xlane.xlu0 %241
    %v243 = vrcp.pop 128.0
    %v244 = vmul.f32 %v212, %v243
    %v245 = vmul.f32 %v214, %v243
    %v246 = vmul.f32 %v216, %v243
    %v247 = vmul.f32 %v218, %v243
    %v248 = vmul.f32 %v220, %v243
    %v249 = vmul.f32 %v222, %v243
    %v250 = vmul.f32 %v224, %v243
    %v251 = vmul.f32 %v226, %v243
    %v252 = vmul.f32 %v228, %v243
    %v253 = vmul.f32 %v230, %v243
    %v254 = vmul.f32 %v232, %v243
    %v255 = vmul.f32 %v234, %v243
    %v256 = vmul.f32 %v236, %v243
    %v257 = vmul.f32 %v238, %v243
    %v258 = vmul.f32 %v240, %v243
    %v259 = vmul.f32 %v242, %v243
    %v260 = vadd.f32 %v244, 1.1920929e-07
    %v261 = vadd.f32 %v245, 1.1920929e-07
    %v262 = vadd.f32 %v246, 1.1920929e-07
    %v263 = vadd.f32 %v247, 1.1920929e-07
    %v264 = vadd.f32 %v248, 1.1920929e-07
    %v265 = vadd.f32 %v249, 1.1920929e-07
    %v266 = vadd.f32 %v250, 1.1920929e-07
    %v267 = vadd.f32 %v251, 1.1920929e-07
    %v268 = vadd.f32 %v252, 1.1920929e-07
    %v269 = vadd.f32 %v253, 1.1920929e-07
    %v270 = vadd.f32 %v254, 1.1920929e-07
    %v271 = vadd.f32 %v255, 1.1920929e-07
    %v272 = vadd.f32 %v256, 1.1920929e-07
    %v273 = vadd.f32 %v257, 1.1920929e-07
    %v274 = vadd.f32 %v258, 1.1920929e-07
    %v275 = vadd.f32 %v259, 1.1920929e-07
    %v276 = vrsqrt.pop %v260
    %v277 = vrsqrt.pop %v261
    %v278 = vrsqrt.pop %v262
    %v279 = vrsqrt.pop %v263
    %v280 = vrsqrt.pop %v264
    %v281 = vrsqrt.pop %v265
    %v282 = vrsqrt.pop %v266
    %v283 = vrsqrt.pop %v267
    %v284 = vrsqrt.pop %v268
    %v285 = vrsqrt.pop %v269
    %v286 = vrsqrt.pop %v270
    %v287 = vrsqrt.pop %v271
    %v288 = vrsqrt.pop %v272
    %v289 = vrsqrt.pop %v273
    %v290 = vrsqrt.pop %v274
    %v291 = vrsqrt.pop %v275
    %v292 = vmul.f32 %v133, %v276
    %v293 = vmul.f32 %v136, %v277
    %v294 = vmul.f32 %v141, %v278
    %v295 = vmul.f32 %v144, %v279
    %v296 = vmul.f32 %v149, %v280
    %v297 = vmul.f32 %v152, %v281
    %v298 = vmul.f32 %v157, %v282
    %v299 = vmul.f32 %v160, %v283
    %v300 = vmul.f32 %v165, %v284
    %v301 = vmul.f32 %v168, %v285
    %v302 = vmul.f32 %v173, %v286
    %v303 = vmul.f32 %v176, %v287
    %v304 = vmul.f32 %v181, %v288
    %v305 = vmul.f32 %v184, %v289
    %v306 = vmul.f32 %v189, %v290
    %v307 = vmul.f32 %v192, %v291
    %v308 = vld [vmem:[%s3] sm:$0x1]
    %v310 = vlaneseq
    %v311 = vshrl.u32 %v310, 7
    %v312 = vsub.s32 0, %v311
    %v313 = vrot.slane %v308, %v312
    %v315 = vmul.f32 %v292, %v313
    %v316 = vmul.f32 %v293, %v313
    %v317 = vmul.f32 %v294, %v313
    %v318 = vmul.f32 %v295, %v313
    %v319 = vmul.f32 %v296, %v313
    %v320 = vmul.f32 %v297, %v313
    %v321 = vmul.f32 %v298, %v313
    %v322 = vmul.f32 %v299, %v313
    %v323 = vmul.f32 %v300, %v313
    %v324 = vmul.f32 %v301, %v313
    %v325 = vmul.f32 %v302, %v313
    %v326 = vmul.f32 %v303, %v313
    %v327 = vmul.f32 %v304, %v313
    %v328 = vmul.f32 %v305, %v313
    %v329 = vmul.f32 %v306, %v313
    %v330 = vmul.f32 %v307, %v313
    %v331 = vxor.u32 %v315, 2147483648
    %v332 = vxor.u32 %v316, 2147483648
    %v333 = vxor.u32 %v317, 2147483648
    %v334 = vxor.u32 %v318, 2147483648
    %v335 = vxor.u32 %v319, 2147483648
    %v336 = vxor.u32 %v320, 2147483648
    %v337 = vxor.u32 %v321, 2147483648
    %v338 = vxor.u32 %v322, 2147483648
    %v339 = vxor.u32 %v323, 2147483648
    %v340 = vxor.u32 %v324, 2147483648
    %v341 = vxor.u32 %v325, 2147483648
    %v342 = vxor.u32 %v326, 2147483648
    %v343 = vxor.u32 %v327, 2147483648
    %v344 = vxor.u32 %v328, 2147483648
    %v345 = vxor.u32 %v329, 2147483648
    %v346 = vxor.u32 %v330, 2147483648
    %v347 = vmul.f32 %v331, 1.442695
    %v348 = vpow.pop %v347
    %v349 = vmul.f32 %v332, 1.442695
    %v350 = vpow.pop %v349
    %v351 = vmul.f32 %v333, 1.442695
    %v352 = vpow.pop %v351
    %v353 = vmul.f32 %v334, 1.442695
    %v354 = vpow.pop %v353
    %v355 = vmul.f32 %v335, 1.442695
    %v356 = vpow.pop %v355
    %v357 = vmul.f32 %v336, 1.442695
    %v358 = vpow.pop %v357
    %v359 = vmul.f32 %v337, 1.442695
    %v360 = vpow.pop %v359
    %v361 = vmul.f32 %v338, 1.442695
    %v362 = vpow.pop %v361
    %v363 = vmul.f32 %v339, 1.442695
    %v364 = vpow.pop %v363
    %v365 = vmul.f32 %v340, 1.442695
    %v366 = vpow.pop %v365
    %v367 = vmul.f32 %v341, 1.442695
    %v368 = vpow.pop %v367
    %v369 = vmul.f32 %v342, 1.442695
    %v370 = vpow.pop %v369
    %v371 = vmul.f32 %v343, 1.442695
    %v372 = vpow.pop %v371
    %v373 = vmul.f32 %v344, 1.442695
    %v374 = vpow.pop %v373
    %v375 = vmul.f32 %v345, 1.442695
    %v376 = vpow.pop %v375
    %v377 = vmul.f32 %v346, 1.442695
    %v378 = vpow.pop %v377
    %v379 = vadd.f32 %v348, 1.0
    %v380 = vadd.f32 %v350, 1.0
    %v381 = vadd.f32 %v352, 1.0
    %v382 = vadd.f32 %v354, 1.0
    %v383 = vadd.f32 %v356, 1.0
    %v384 = vadd.f32 %v358, 1.0
    %v385 = vadd.f32 %v360, 1.0
    %v386 = vadd.f32 %v362, 1.0
    %v387 = vadd.f32 %v364, 1.0
    %v388 = vadd.f32 %v366, 1.0
    %v389 = vadd.f32 %v368, 1.0
    %v390 = vadd.f32 %v370, 1.0
    %v391 = vadd.f32 %v372, 1.0
    %v392 = vadd.f32 %v374, 1.0
    %v393 = vadd.f32 %v376, 1.0
    %v394 = vadd.f32 %v378, 1.0
    %v395 = vrcp.pop %v379
    %v396 = vmul.f32 1.0, %v395
    %v397 = vrcp.pop %v380
    %v398 = vmul.f32 1.0, %v397
    %v399 = vrcp.pop %v381
    %v400 = vmul.f32 1.0, %v399
    %v401 = vrcp.pop %v382
    %v402 = vmul.f32 1.0, %v401
    %v403 = vrcp.pop %v383
    %v404 = vmul.f32 1.0, %v403
    %v405 = vrcp.pop %v384
    %v406 = vmul.f32 1.0, %v405
    %v407 = vrcp.pop %v385
    %v408 = vmul.f32 1.0, %v407
    %v409 = vrcp.pop %v386
    %v410 = vmul.f32 1.0, %v409
    %v411 = vrcp.pop %v387
    %v412 = vmul.f32 1.0, %v411
    %v413 = vrcp.pop %v388
    %v414 = vmul.f32 1.0, %v413
    %v415 = vrcp.pop %v389
    %v416 = vmul.f32 1.0, %v415
    %v417 = vrcp.pop %v390
    %v418 = vmul.f32 1.0, %v417
    %v419 = vrcp.pop %v391
    %v420 = vmul.f32 1.0, %v419
    %v421 = vrcp.pop %v392
    %v422 = vmul.f32 1.0, %v421
    %v423 = vrcp.pop %v393
    %v424 = vmul.f32 1.0, %v423
    %v425 = vrcp.pop %v394
    %v426 = vmul.f32 1.0, %v425
    %v427 = vmul.f32 %v315, %v396
    %v428 = vmul.f32 %v316, %v398
    %v429 = vmul.f32 %v317, %v400
    %v430 = vmul.f32 %v318, %v402
    %v431 = vmul.f32 %v319, %v404
    %v432 = vmul.f32 %v320, %v406
    %v433 = vmul.f32 %v321, %v408
    %v434 = vmul.f32 %v322, %v410
    %v435 = vmul.f32 %v323, %v412
    %v436 = vmul.f32 %v324, %v414
    %v437 = vmul.f32 %v325, %v416
    %v438 = vmul.f32 %v326, %v418
    %v439 = vmul.f32 %v327, %v420
    %v440 = vmul.f32 %v328, %v422
    %v441 = vmul.f32 %v329, %v424
    %v442 = vmul.f32 %v330, %v426
    %v443 = vpack.c.bf16 %v428, %v427
    %v444 = vpack.c.bf16 %v430, %v429
    %v445 = vpack.c.bf16 %v432, %v431
    %v446 = vpack.c.bf16 %v434, %v433
    %v447 = vpack.c.bf16 %v436, %v435
    %v448 = vpack.c.bf16 %v438, %v437
    %v449 = vpack.c.bf16 %v440, %v439
    %v450 = vpack.c.bf16 %v442, %v441
    %v451 = vld [vmem:[%s4] sm:$0xf]
    %v452 = vld [vmem:[%s4 + $0x4] sm:$0xf]
    %v453 = vld [vmem:[%s4 + $0x8] sm:$0xf]
    %v454 = vld [vmem:[%s4 + $0xc] sm:$0xf]
    %v455 = vld [vmem:[%s4 + $0x10] sm:$0xf]
    %v456 = vld [vmem:[%s4 + $0x14] sm:$0xf]
    %v457 = vld [vmem:[%s4 + $0x18] sm:$0xf]
    %v458 = vld [vmem:[%s4 + $0x1c] sm:$0xf]
    %v459 = vld [vmem:[%s4 + $0x20] sm:$0xf]
    %v460 = vld [vmem:[%s4 + $0x24] sm:$0xf]
    %v461 = vld [vmem:[%s4 + $0x28] sm:$0xf]
    %v462 = vld [vmem:[%s4 + $0x2c] sm:$0xf]
    %v463 = vld [vmem:[%s4 + $0x30] sm:$0xf]
    %v464 = vld [vmem:[%s4 + $0x34] sm:$0xf]
    %v465 = vld [vmem:[%s4 + $0x38] sm:$0xf]
    %v466 = vld [vmem:[%s4 + $0x3c] sm:$0xf]
    %v467 = vld [vmem:[%s5] sm:$0x1]
    %v469 = vlaneseq
    %v470 = vshrl.u32 %v469, 7
    %v471 = vsub.s32 0, %v470
    %v472 = vrot.slane %v467, %v471
    %v490 = vunpack.c.l.b16 %v451
    %v491 = vunpack.c.l.b16 %v452
    %v492 = vunpack.c.l.b16 %v453
    %v493 = vunpack.c.l.b16 %v454
    %v494 = vunpack.c.l.b16 %v455
    %v495 = vunpack.c.l.b16 %v456
    %v496 = vunpack.c.l.b16 %v457
    %v497 = vunpack.c.l.b16 %v458
    %v498 = vunpack.c.l.b16 %v459
    %v499 = vunpack.c.l.b16 %v460
    %v500 = vunpack.c.l.b16 %v461
    %v501 = vunpack.c.l.b16 %v462
    %v502 = vunpack.c.l.b16 %v463
    %v503 = vunpack.c.l.b16 %v464
    %v504 = vunpack.c.l.b16 %v465
    %v505 = vunpack.c.l.b16 %v466
    %v506 = vpack.c.b16 %v491, %v490
    %v507 = vpack.c.b16 %v493, %v492
    %v508 = vpack.c.b16 %v495, %v494
    %v509 = vpack.c.b16 %v497, %v496
    %v510 = vpack.c.b16 %v499, %v498
    %v511 = vpack.c.b16 %v501, %v500
    %v512 = vpack.c.b16 %v503, %v502
    %v513 = vpack.c.b16 %v505, %v504
    %522 = vmatprep.subr.bf16.mxu0 0
    %523 = vmatpush1.bf16.msra.mxu0 %v513
    %524 = vmatprep.subr.bf16.mxu0 0
    %525 = vmatpush1.bf16.msra.mxu0 %v512
    %526 = vmatprep.subr.bf16.mxu0 0
    %527 = vmatpush1.bf16.msra.mxu0 %v511
    %528 = vmatprep.subr.bf16.mxu0 0
    %529 = vmatpush1.bf16.msra.mxu0 %v510
    %530 = vmatprep.subr.bf16.mxu0 0
    %531 = vmatpush1.bf16.msra.mxu0 %v509
    %532 = vmatprep.subr.bf16.mxu0 0
    %533 = vmatpush1.bf16.msra.mxu0 %v508
    %534 = vmatprep.subr.bf16.mxu0 0
    %535 = vmatpush1.bf16.msra.mxu0 %v507
    %536 = vmatprep.subr.bf16.mxu0 0
    %537 = vmatpush1.bf16.msra.mxu0 %v506
    %538 = vmatprep.subr.bf16.mxu0 0
    %539 = vmatpush2.bf16.msra.mxu0 0
    %540 = vmatprep.subr.bf16.mxu0 0
    %541 = vmatpush2.bf16.msra.mxu0 0
    %542 = vmatprep.subr.bf16.mxu0 0
    %543 = vmatpush2.bf16.msra.mxu0 0
    %544 = vmatprep.subr.bf16.mxu0 0
    %545 = vmatpush2.bf16.msra.mxu0 0
    %546 = vmatprep.subr.bf16.mxu0 0
    %547 = vmatpush2.bf16.msra.mxu0 0
    %548 = vmatprep.subr.bf16.mxu0 0
    %549 = vmatpush2.bf16.msra.mxu0 0
    %550 = vmatprep.subr.bf16.mxu0 0
    %551 = vmatpush2.bf16.msra.mxu0 0
    %552 = vmatprep.subr.bf16.mxu0 0
    %553 = vmatpush2.bf16.msra.mxu0 0
    %554 = vmatprep.mubr.bf16.mxu0 0
    %555 = vmatmul.mubr.bf16.gmra.mxu0 %v443
    %v556 = vpop.f32.mrf.mxu0
    %v557 = vadd.f32 %v472, %v556
    %v558 = vpop.f32.mrf.mxu0
    %v559 = vpop.f32.mrf.mxu0
    %v560 = vadd.f32 %v472, %v559
    %v561 = vpop.f32.mrf.mxu0
    %562 = vmatprep.mubr.bf16.mxu0 0
    %563 = vmatmul.mubr.bf16.gmra.mxu0 %v444
    %v564 = vpop.f32.mrf.mxu0
    %v565 = vadd.f32 %v472, %v564
    %v566 = vpop.f32.mrf.mxu0
    %v567 = vpop.f32.mrf.mxu0
    %v568 = vadd.f32 %v472, %v567
    %v569 = vpop.f32.mrf.mxu0
    %570 = vmatprep.mubr.bf16.mxu0 0
    %571 = vmatmul.mubr.bf16.gmra.mxu0 %v445
    %v572 = vpop.f32.mrf.mxu0
    %v573 = vadd.f32 %v472, %v572
    %v574 = vpop.f32.mrf.mxu0
    %v575 = vpop.f32.mrf.mxu0
    %v576 = vadd.f32 %v472, %v575
    %v577 = vpop.f32.mrf.mxu0
    %578 = vmatprep.mubr.bf16.mxu0 0
    %579 = vmatmul.mubr.bf16.gmra.mxu0 %v446
    %v580 = vpop.f32.mrf.mxu0
    %v581 = vadd.f32 %v472, %v580
    %v582 = vpop.f32.mrf.mxu0
    %v583 = vpop.f32.mrf.mxu0
    %v584 = vadd.f32 %v472, %v583
    %v585 = vpop.f32.mrf.mxu0
    %586 = vmatprep.mubr.bf16.mxu0 0
    %587 = vmatmul.mubr.bf16.gmra.mxu0 %v447
    %v588 = vpop.f32.mrf.mxu0
    %v589 = vadd.f32 %v472, %v588
    %v590 = vpop.f32.mrf.mxu0
    %v591 = vpop.f32.mrf.mxu0
    %v592 = vadd.f32 %v472, %v591
    %v593 = vpop.f32.mrf.mxu0
    %594 = vmatprep.mubr.bf16.mxu0 0
    %595 = vmatmul.mubr.bf16.gmra.mxu0 %v448
    %v596 = vpop.f32.mrf.mxu0
    %v597 = vadd.f32 %v472, %v596
    %v598 = vpop.f32.mrf.mxu0
    %v599 = vpop.f32.mrf.mxu0
    %v600 = vadd.f32 %v472, %v599
    %v601 = vpop.f32.mrf.mxu0
    %602 = vmatprep.mubr.bf16.mxu0 0
    %603 = vmatmul.mubr.bf16.gmra.mxu0 %v449
    %v604 = vpop.f32.mrf.mxu0
    %v605 = vadd.f32 %v472, %v604
    %v606 = vpop.f32.mrf.mxu0
    %v607 = vpop.f32.mrf.mxu0
    %v608 = vadd.f32 %v472, %v607
    %v609 = vpop.f32.mrf.mxu0
    %610 = vmatprep.mubr.bf16.mxu0 0
    %611 = vmatmul.mubr.bf16.gmra.mxu0 %v450
    %v612 = vpop.f32.mrf.mxu0
    %v613 = vadd.f32 %v472, %v612
    %v614 = vpop.f32.mrf.mxu0
    %v615 = vpop.f32.mrf.mxu0
    %v616 = vadd.f32 %v472, %v615
    %v617 = vpop.f32.mrf.mxu0
    %618 = vdwg.mxu0
    %v619 = vmul.f32 %v557, %v557
    %v620 = vmul.f32 %v560, %v560
    %v621 = vmul.f32 %v565, %v565
    %v622 = vmul.f32 %v568, %v568
    %v623 = vmul.f32 %v573, %v573
    %v624 = vmul.f32 %v576, %v576
    %v625 = vmul.f32 %v581, %v581
    %v626 = vmul.f32 %v584, %v584
    %v627 = vmul.f32 %v589, %v589
    %v628 = vmul.f32 %v592, %v592
    %v629 = vmul.f32 %v597, %v597
    %v630 = vmul.f32 %v600, %v600
    %v631 = vmul.f32 %v605, %v605
    %v632 = vmul.f32 %v608, %v608
    %v633 = vmul.f32 %v613, %v613
    %v634 = vmul.f32 %v616, %v616
    %635 = vadd.xlane.f32.xlu0 %v619
    %v636 = vpop.xlane.xlu0 %635
    %637 = vadd.xlane.f32.xlu0 %v620
    %v638 = vpop.xlane.xlu0 %637
    %639 = vadd.xlane.f32.xlu0 %v621
    %v640 = vpop.xlane.xlu0 %639
    %641 = vadd.xlane.f32.xlu0 %v622
    %v642 = vpop.xlane.xlu0 %641
    %643 = vadd.xlane.f32.xlu0 %v623
    %v644 = vpop.xlane.xlu0 %643
    %645 = vadd.xlane.f32.xlu0 %v624
    %v646 = vpop.xlane.xlu0 %645
    %647 = vadd.xlane.f32.xlu0 %v625
    %v648 = vpop.xlane.xlu0 %647
    %649 = vadd.xlane.f32.xlu0 %v626
    %v650 = vpop.xlane.xlu0 %649
    %651 = vadd.xlane.f32.xlu0 %v627
    %v652 = vpop.xlane.xlu0 %651
    %653 = vadd.xlane.f32.xlu0 %v628
    %v654 = vpop.xlane.xlu0 %653
    %655 = vadd.xlane.f32.xlu0 %v629
    %v656 = vpop.xlane.xlu0 %655
    %657 = vadd.xlane.f32.xlu0 %v630
    %v658 = vpop.xlane.xlu0 %657
    %659 = vadd.xlane.f32.xlu0 %v631
    %v660 = vpop.xlane.xlu0 %659
    %661 = vadd.xlane.f32.xlu0 %v632
    %v662 = vpop.xlane.xlu0 %661
    %663 = vadd.xlane.f32.xlu0 %v633
    %v664 = vpop.xlane.xlu0 %663
    %665 = vadd.xlane.f32.xlu0 %v634
    %v666 = vpop.xlane.xlu0 %665
    %v667 = vmul.f32 %v636, %v243
    %v668 = vmul.f32 %v638, %v243
    %v669 = vmul.f32 %v640, %v243
    %v670 = vmul.f32 %v642, %v243
    %v671 = vmul.f32 %v644, %v243
    %v672 = vmul.f32 %v646, %v243
    %v673 = vmul.f32 %v648, %v243
    %v674 = vmul.f32 %v650, %v243
    %v675 = vmul.f32 %v652, %v243
    %v676 = vmul.f32 %v654, %v243
    %v677 = vmul.f32 %v656, %v243
    %v678 = vmul.f32 %v658, %v243
    %v679 = vmul.f32 %v660, %v243
    %v680 = vmul.f32 %v662, %v243
    %v681 = vmul.f32 %v664, %v243
    %v682 = vmul.f32 %v666, %v243
    %v683 = vadd.f32 %v667, 1.1920929e-07
    %v684 = vadd.f32 %v668, 1.1920929e-07
    %v685 = vadd.f32 %v669, 1.1920929e-07
    %v686 = vadd.f32 %v670, 1.1920929e-07
    %v687 = vadd.f32 %v671, 1.1920929e-07
    %v688 = vadd.f32 %v672, 1.1920929e-07
    %v689 = vadd.f32 %v673, 1.1920929e-07
    %v690 = vadd.f32 %v674, 1.1920929e-07
    %v691 = vadd.f32 %v675, 1.1920929e-07
    %v692 = vadd.f32 %v676, 1.1920929e-07
    %v693 = vadd.f32 %v677, 1.1920929e-07
    %v694 = vadd.f32 %v678, 1.1920929e-07
    %v695 = vadd.f32 %v679, 1.1920929e-07
    %v696 = vadd.f32 %v680, 1.1920929e-07
    %v697 = vadd.f32 %v681, 1.1920929e-07
    %v698 = vadd.f32 %v682, 1.1920929e-07
    %v699 = vrsqrt.pop %v683
    %v700 = vrsqrt.pop %v684
    %v701 = vrsqrt.pop %v685
    %v702 = vrsqrt.pop %v686
    %v703 = vrsqrt.pop %v687
    %v704 = vrsqrt.pop %v688
    %v705 = vrsqrt.pop %v689
    %v706 = vrsqrt.pop %v690
    %v707 = vrsqrt.pop %v691
    %v708 = vrsqrt.pop %v692
    %v709 = vrsqrt.pop %v693
    %v710 = vrsqrt.pop %v694
    %v711 = vrsqrt.pop %v695
    %v712 = vrsqrt.pop %v696
    %v713 = vrsqrt.pop %v697
    %v714 = vrsqrt.pop %v698
    %v715 = vmul.f32 %v557, %v699
    %v716 = vmul.f32 %v560, %v700
    %v717 = vmul.f32 %v565, %v701
    %v718 = vmul.f32 %v568, %v702
    %v719 = vmul.f32 %v573, %v703
    %v720 = vmul.f32 %v576, %v704
    %v721 = vmul.f32 %v581, %v705
    %v722 = vmul.f32 %v584, %v706
    %v723 = vmul.f32 %v589, %v707
    %v724 = vmul.f32 %v592, %v708
    %v725 = vmul.f32 %v597, %v709
    %v726 = vmul.f32 %v600, %v710
    %v727 = vmul.f32 %v605, %v711
    %v728 = vmul.f32 %v608, %v712
    %v729 = vmul.f32 %v613, %v713
    %v730 = vmul.f32 %v616, %v714
    %v731 = vld [vmem:[%s6] sm:$0x1]
    %v733 = vlaneseq
    %v734 = vshrl.u32 %v733, 7
    %v735 = vsub.s32 0, %v734
    %v736 = vrot.slane %v731, %v735
    %v738 = vmul.f32 %v715, %v736
    %v739 = vmul.f32 %v716, %v736
    %v740 = vmul.f32 %v717, %v736
    %v741 = vmul.f32 %v718, %v736
    %v742 = vmul.f32 %v719, %v736
    %v743 = vmul.f32 %v720, %v736
    %v744 = vmul.f32 %v721, %v736
    %v745 = vmul.f32 %v722, %v736
    %v746 = vmul.f32 %v723, %v736
    %v747 = vmul.f32 %v724, %v736
    %v748 = vmul.f32 %v725, %v736
    %v749 = vmul.f32 %v726, %v736
    %v750 = vmul.f32 %v727, %v736
    %v751 = vmul.f32 %v728, %v736
    %v752 = vmul.f32 %v729, %v736
    %v753 = vmul.f32 %v730, %v736
    %v754 = vxor.u32 %v738, 2147483648
    %v755 = vxor.u32 %v739, 2147483648
    %v756 = vxor.u32 %v740, 2147483648
    %v757 = vxor.u32 %v741, 2147483648
    %v758 = vxor.u32 %v742, 2147483648
    %v759 = vxor.u32 %v743, 2147483648
    %v760 = vxor.u32 %v744, 2147483648
    %v761 = vxor.u32 %v745, 2147483648
    %v762 = vxor.u32 %v746, 2147483648
    %v763 = vxor.u32 %v747, 2147483648
    %v764 = vxor.u32 %v748, 2147483648
    %v765 = vxor.u32 %v749, 2147483648
    %v766 = vxor.u32 %v750, 2147483648
    %v767 = vxor.u32 %v751, 2147483648
    %v768 = vxor.u32 %v752, 2147483648
    %v769 = vxor.u32 %v753, 2147483648
    %v770 = vmul.f32 %v754, 1.442695
    %v771 = vpow.pop %v770
    %v772 = vmul.f32 %v755, 1.442695
    %v773 = vpow.pop %v772
    %v774 = vmul.f32 %v756, 1.442695
    %v775 = vpow.pop %v774
    %v776 = vmul.f32 %v757, 1.442695
    %v777 = vpow.pop %v776
    %v778 = vmul.f32 %v758, 1.442695
    %v779 = vpow.pop %v778
    %v780 = vmul.f32 %v759, 1.442695
    %v781 = vpow.pop %v780
    %v782 = vmul.f32 %v760, 1.442695
    %v783 = vpow.pop %v782
    %v784 = vmul.f32 %v761, 1.442695
    %v785 = vpow.pop %v784
    %v786 = vmul.f32 %v762, 1.442695
    %v787 = vpow.pop %v786
    %v788 = vmul.f32 %v763, 1.442695
    %v789 = vpow.pop %v788
    %v790 = vmul.f32 %v764, 1.442695
    %v791 = vpow.pop %v790
    %v792 = vmul.f32 %v765, 1.442695
    %v793 = vpow.pop %v792
    %v794 = vmul.f32 %v766, 1.442695
    %v795 = vpow.pop %v794
    %v796 = vmul.f32 %v767, 1.442695
    %v797 = vpow.pop %v796
    %v798 = vmul.f32 %v768, 1.442695
    %v799 = vpow.pop %v798
    %v800 = vmul.f32 %v769, 1.442695
    %v801 = vpow.pop %v800
    %v802 = vadd.f32 %v771, 1.0
    %v803 = vadd.f32 %v773, 1.0
    %v804 = vadd.f32 %v775, 1.0
    %v805 = vadd.f32 %v777, 1.0
    %v806 = vadd.f32 %v779, 1.0
    %v807 = vadd.f32 %v781, 1.0
    %v808 = vadd.f32 %v783, 1.0
    %v809 = vadd.f32 %v785, 1.0
    %v810 = vadd.f32 %v787, 1.0
    %v811 = vadd.f32 %v789, 1.0
    %v812 = vadd.f32 %v791, 1.0
    %v813 = vadd.f32 %v793, 1.0
    %v814 = vadd.f32 %v795, 1.0
    %v815 = vadd.f32 %v797, 1.0
    %v816 = vadd.f32 %v799, 1.0
    %v817 = vadd.f32 %v801, 1.0
    %v818 = vrcp.pop %v802
    %v819 = vmul.f32 1.0, %v818
    %v820 = vrcp.pop %v803
    %v821 = vmul.f32 1.0, %v820
    %v822 = vrcp.pop %v804
    %v823 = vmul.f32 1.0, %v822
    %v824 = vrcp.pop %v805
    %v825 = vmul.f32 1.0, %v824
    %v826 = vrcp.pop %v806
    %v827 = vmul.f32 1.0, %v826
    %v828 = vrcp.pop %v807
    %v829 = vmul.f32 1.0, %v828
    %v830 = vrcp.pop %v808
    %v831 = vmul.f32 1.0, %v830
    %v832 = vrcp.pop %v809
    %v833 = vmul.f32 1.0, %v832
    %v834 = vrcp.pop %v810
    %v835 = vmul.f32 1.0, %v834
    %v836 = vrcp.pop %v811
    %v837 = vmul.f32 1.0, %v836
    %v838 = vrcp.pop %v812
    %v839 = vmul.f32 1.0, %v838
    %v840 = vrcp.pop %v813
    %v841 = vmul.f32 1.0, %v840
    %v842 = vrcp.pop %v814
    %v843 = vmul.f32 1.0, %v842
    %v844 = vrcp.pop %v815
    %v845 = vmul.f32 1.0, %v844
    %v846 = vrcp.pop %v816
    %v847 = vmul.f32 1.0, %v846
    %v848 = vrcp.pop %v817
    %v849 = vmul.f32 1.0, %v848
    %v850 = vmul.f32 %v738, %v819
    %v851 = vmul.f32 %v739, %v821
    %v852 = vmul.f32 %v740, %v823
    %v853 = vmul.f32 %v741, %v825
    %v854 = vmul.f32 %v742, %v827
    %v855 = vmul.f32 %v743, %v829
    %v856 = vmul.f32 %v744, %v831
    %v857 = vmul.f32 %v745, %v833
    %v858 = vmul.f32 %v746, %v835
    %v859 = vmul.f32 %v747, %v837
    %v860 = vmul.f32 %v748, %v839
    %v861 = vmul.f32 %v749, %v841
    %v862 = vmul.f32 %v750, %v843
    %v863 = vmul.f32 %v751, %v845
    %v864 = vmul.f32 %v752, %v847
    %v865 = vmul.f32 %v753, %v849
    %v866 = vpack.c.bf16 %v851, %v850
    %v867 = vpack.c.bf16 %v853, %v852
    %v868 = vpack.c.bf16 %v855, %v854
    %v869 = vpack.c.bf16 %v857, %v856
    %v870 = vpack.c.bf16 %v859, %v858
    %v871 = vpack.c.bf16 %v861, %v860
    %v872 = vpack.c.bf16 %v863, %v862
    %v873 = vpack.c.bf16 %v865, %v864
    %v874 = vld [vmem:[%s7] sm:$0xf]
    %v875 = vld [vmem:[%s7 + $0x4] sm:$0xf]
    %v876 = vld [vmem:[%s7 + $0x8] sm:$0xf]
    %v877 = vld [vmem:[%s7 + $0xc] sm:$0xf]
    %v878 = vld [vmem:[%s7 + $0x10] sm:$0xf]
    %v879 = vld [vmem:[%s7 + $0x14] sm:$0xf]
    %v880 = vld [vmem:[%s7 + $0x18] sm:$0xf]
    %v881 = vld [vmem:[%s7 + $0x1c] sm:$0xf]
    %v882 = vld [vmem:[%s7 + $0x20] sm:$0xf]
    %v883 = vld [vmem:[%s7 + $0x24] sm:$0xf]
    %v884 = vld [vmem:[%s7 + $0x28] sm:$0xf]
    %v885 = vld [vmem:[%s7 + $0x2c] sm:$0xf]
    %v886 = vld [vmem:[%s7 + $0x30] sm:$0xf]
    %v887 = vld [vmem:[%s7 + $0x34] sm:$0xf]
    %v888 = vld [vmem:[%s7 + $0x38] sm:$0xf]
    %v889 = vld [vmem:[%s7 + $0x3c] sm:$0xf]
    %v890 = vld [vmem:[%s8] sm:$0x1]
    %v892 = vlaneseq
    %v893 = vshrl.u32 %v892, 7
    %v894 = vsub.s32 0, %v893
    %v895 = vrot.slane %v890, %v894
    %v913 = vunpack.c.l.b16 %v874
    %v914 = vunpack.c.l.b16 %v875
    %v915 = vunpack.c.l.b16 %v876
    %v916 = vunpack.c.l.b16 %v877
    %v917 = vunpack.c.l.b16 %v878
    %v918 = vunpack.c.l.b16 %v879
    %v919 = vunpack.c.l.b16 %v880
    %v920 = vunpack.c.l.b16 %v881
    %v921 = vunpack.c.l.b16 %v882
    %v922 = vunpack.c.l.b16 %v883
    %v923 = vunpack.c.l.b16 %v884
    %v924 = vunpack.c.l.b16 %v885
    %v925 = vunpack.c.l.b16 %v886
    %v926 = vunpack.c.l.b16 %v887
    %v927 = vunpack.c.l.b16 %v888
    %v928 = vunpack.c.l.b16 %v889
    %v929 = vpack.c.b16 %v914, %v913
    %v930 = vpack.c.b16 %v916, %v915
    %v931 = vpack.c.b16 %v918, %v917
    %v932 = vpack.c.b16 %v920, %v919
    %v933 = vpack.c.b16 %v922, %v921
    %v934 = vpack.c.b16 %v924, %v923
    %v935 = vpack.c.b16 %v926, %v925
    %v936 = vpack.c.b16 %v928, %v927
    %945 = vmatprep.subr.bf16.mxu0 0
    %946 = vmatpush1.bf16.msra.mxu0 %v936
    %947 = vmatprep.subr.bf16.mxu0 0
    %948 = vmatpush1.bf16.msra.mxu0 %v935
    %949 = vmatprep.subr.bf16.mxu0 0
    %950 = vmatpush1.bf16.msra.mxu0 %v934
    %951 = vmatprep.subr.bf16.mxu0 0
    %952 = vmatpush1.bf16.msra.mxu0 %v933
    %953 = vmatprep.subr.bf16.mxu0 0
    %954 = vmatpush1.bf16.msra.mxu0 %v932
    %955 = vmatprep.subr.bf16.mxu0 0
    %956 = vmatpush1.bf16.msra.mxu0 %v931
    %957 = vmatprep.subr.bf16.mxu0 0
    %958 = vmatpush1.bf16.msra.mxu0 %v930
    %959 = vmatprep.subr.bf16.mxu0 0
    %960 = vmatpush1.bf16.msra.mxu0 %v929
    %961 = vmatprep.subr.bf16.mxu0 0
    %962 = vmatpush2.bf16.msra.mxu0 0
    %963 = vmatprep.subr.bf16.mxu0 0
    %964 = vmatpush2.bf16.msra.mxu0 0
    %965 = vmatprep.subr.bf16.mxu0 0
    %966 = vmatpush2.bf16.msra.mxu0 0
    %967 = vmatprep.subr.bf16.mxu0 0
    %968 = vmatpush2.bf16.msra.mxu0 0
    %969 = vmatprep.subr.bf16.mxu0 0
    %970 = vmatpush2.bf16.msra.mxu0 0
    %971 = vmatprep.subr.bf16.mxu0 0
    %972 = vmatpush2.bf16.msra.mxu0 0
    %973 = vmatprep.subr.bf16.mxu0 0
    %974 = vmatpush2.bf16.msra.mxu0 0
    %975 = vmatprep.subr.bf16.mxu0 0
    %976 = vmatpush2.bf16.msra.mxu0 0
    %977 = vmatprep.mubr.bf16.mxu0 0
    %978 = vmatmul.mubr.bf16.gmra.mxu0 %v866
    %v979 = vpop.f32.mrf.mxu0
    %v980 = vadd.f32 %v895, %v979
    %v981 = vpop.f32.mrf.mxu0
    %v982 = vpop.f32.mrf.mxu0
    %v983 = vadd.f32 %v895, %v982
    %v984 = vpop.f32.mrf.mxu0
    %985 = vmatprep.mubr.bf16.mxu0 0
    %986 = vmatmul.mubr.bf16.gmra.mxu0 %v867
    %v987 = vpop.f32.mrf.mxu0
    %v988 = vadd.f32 %v895, %v987
    %v989 = vpop.f32.mrf.mxu0
    %v990 = vpop.f32.mrf.mxu0
    %v991 = vadd.f32 %v895, %v990
    %v992 = vpop.f32.mrf.mxu0
    %993 = vmatprep.mubr.bf16.mxu0 0
    %994 = vmatmul.mubr.bf16.gmra.mxu0 %v868
    %v995 = vpop.f32.mrf.mxu0
    %v996 = vadd.f32 %v895, %v995
    %v997 = vpop.f32.mrf.mxu0
    %v998 = vpop.f32.mrf.mxu0
    %v999 = vadd.f32 %v895, %v998
    %v1000 = vpop.f32.mrf.mxu0
    %1001 = vmatprep.mubr.bf16.mxu0 0
    %1002 = vmatmul.mubr.bf16.gmra.mxu0 %v869
    %v1003 = vpop.f32.mrf.mxu0
    %v1004 = vadd.f32 %v895, %v1003
    %v1005 = vpop.f32.mrf.mxu0
    %v1006 = vpop.f32.mrf.mxu0
    %v1007 = vadd.f32 %v895, %v1006
    %v1008 = vpop.f32.mrf.mxu0
    %1009 = vmatprep.mubr.bf16.mxu0 0
    %1010 = vmatmul.mubr.bf16.gmra.mxu0 %v870
    %v1011 = vpop.f32.mrf.mxu0
    %v1012 = vadd.f32 %v895, %v1011
    %v1013 = vpop.f32.mrf.mxu0
    %v1014 = vpop.f32.mrf.mxu0
    %v1015 = vadd.f32 %v895, %v1014
    %v1016 = vpop.f32.mrf.mxu0
    %1017 = vmatprep.mubr.bf16.mxu0 0
    %1018 = vmatmul.mubr.bf16.gmra.mxu0 %v871
    %v1019 = vpop.f32.mrf.mxu0
    %v1020 = vadd.f32 %v895, %v1019
    %v1021 = vpop.f32.mrf.mxu0
    %v1022 = vpop.f32.mrf.mxu0
    %v1023 = vadd.f32 %v895, %v1022
    %v1024 = vpop.f32.mrf.mxu0
    %1025 = vmatprep.mubr.bf16.mxu0 0
    %1026 = vmatmul.mubr.bf16.gmra.mxu0 %v872
    %v1027 = vpop.f32.mrf.mxu0
    %v1028 = vadd.f32 %v895, %v1027
    %v1029 = vpop.f32.mrf.mxu0
    %v1030 = vpop.f32.mrf.mxu0
    %v1031 = vadd.f32 %v895, %v1030
    %v1032 = vpop.f32.mrf.mxu0
    %1033 = vmatprep.mubr.bf16.mxu0 0
    %1034 = vmatmul.mubr.bf16.gmra.mxu0 %v873
    %v1035 = vpop.f32.mrf.mxu0
    %v1036 = vadd.f32 %v895, %v1035
    %v1037 = vpop.f32.mrf.mxu0
    %v1038 = vpop.f32.mrf.mxu0
    %v1039 = vadd.f32 %v895, %v1038
    %v1040 = vpop.f32.mrf.mxu0
    %1041 = vdwg.mxu0
    %1042 = vst [vmem:[#allocation2] sm:$0xff] %v980
    %1043 = vst [vmem:[#allocation2 + $0x8] sm:$0xff] %v983
    %1044 = vst [vmem:[#allocation2 + $0x10] sm:$0xff] %v988
    %1045 = vst [vmem:[#allocation2 + $0x18] sm:$0xff] %v991
    %1046 = vst [vmem:[#allocation2 + $0x20] sm:$0xff] %v996
    %1047 = vst [vmem:[#allocation2 + $0x28] sm:$0xff] %v999
    %1048 = vst [vmem:[#allocation2 + $0x30] sm:$0xff] %v1004
    %1049 = vst [vmem:[#allocation2 + $0x38] sm:$0xff] %v1007
    %1050 = vst [vmem:[#allocation2 + $0x40] sm:$0xff] %v1012
    %1051 = vst [vmem:[#allocation2 + $0x48] sm:$0xff] %v1015
    %1052 = vst [vmem:[#allocation2 + $0x50] sm:$0xff] %v1020
    %1053 = vst [vmem:[#allocation2 + $0x58] sm:$0xff] %v1023
    %1054 = vst [vmem:[#allocation2 + $0x60] sm:$0xff] %v1028
    %1055 = vst [vmem:[#allocation2 + $0x68] sm:$0xff] %v1031
    %1056 = vst [vmem:[#allocation2 + $0x70] sm:$0xff] %v1036
    %1057 = vst [vmem:[#allocation2 + $0x78] sm:$0xff] %v1039
    // Predicated region
    $region38: #{tpu_custom_call.1} parent=1 // pred_check
      _
    $region39: #{tpu_custom_call.1} parent=1 // pred_check_branch
      %1059 = sbr.rel (0) target = $region41
    $region40: #{tpu_custom_call.1} parent=1 // pred_region
      %s1061 = ssub.s32 2048, 2048
      %1062 = vsyncadd [#allocation3], %s1061
      %s1063 = sshll.u32 [#allocation2], 4
      %s1064 = int_to_ptr.vmem [resolvable:$true] %s1063
      %1069 = dma.vmem_to_hbm [thread:$0]  %s1064, 2048, %s9, [#allocation3], 128, 128, 8
    $region41: #{tpu_custom_call.1} parent=1 // pred_fallthru
      _
    // Predicated region
    $region42: #{tpu_custom_call.1} parent=1 // pred_check
      _
    $region43: #{tpu_custom_call.1} parent=1 // pred_check_branch
      %1071 = sbr.rel (0) target = $region45
    $region44: #{tpu_custom_call.1} parent=1 // pred_region
      %1072 = dma.done [#allocation3], 2048
    $region45: #{tpu_custom_call.1} parent=1 // pred_fallthru
      _
    %1073 = vsyncpa [#allocation3], 1

</llo_original>
